<compile_context>
chip_gen: v7x
topology: tpu7x:2x2x1
jax: 0.10.0
libtpu: 0.0.40
codegen_flags: <defaults>
</compile_context>

<pallas_src>
import jax
import jax.numpy as jnp
from jax import lax
from jax.experimental import pallas as pl
from jax.experimental.pallas import tpu as pltpu


def _round_up(n, m):
    return ((n + m - 1) // m) * m


def _divisors_mult8(n, cap):
    return [d for d in range(8, min(cap, n) + 1, 8) if n % d == 0]


def _pick_tile_n(n, b, cap=256):
    """Largest multiple-of-8 divisor of n (<= cap) that still yields >= 8 grid
    steps (b * n/TN) for DMA/compute overlap and v7x's two TensorCores; falls
    back to the smallest such divisor, then to the full dim (always legal)."""
    divs = _divisors_mult8(n, cap)
    if not divs:
        return n
    for d in sorted(divs, reverse=True):
        if b * (n // d) >= 8:
            return d
    return divs[0]


def _pick_proj_chunk(n, cap=512):
    """Row chunk for the once-per-batch projection (bounds the live MXU result
    before it is written into the VMEM scratch)."""
    divs = _divisors_mult8(n, cap)
    return divs[-1] if divs else n


def _make_edge_conv_kernel(*, B, N, K, TN, PCH, Coutp, gather_center):
    ioff = B * N * K  # offset of the center-index stream in the flat idx array

    def kernel(idx_ref, xv_ref, wc_ref, b_ref, o_ref, p1_ref, hn_ref, mx_ref):
        b = pl.program_id(0)
        nt = pl.program_id(1)

        # ---- project every vertex of this batch ONCE:  [p1 | h] = xv @ [W1 | W2]
        # xv block is constant over nt (DMA'd once per batch); both projections are
        # fused into a single MXU pass over the widened RHS.
        @pl.when(nt == 0)
        def _():
            wc = wc_ref[...]

            def proj(c, carry):
                r0 = pl.multiple_of(c * PCH, PCH)
                hc = jnp.dot(xv_ref[0, pl.ds(r0, PCH), :], wc,
                             preferred_element_type=jnp.float32)
                p1_ref[pl.ds(r0, PCH), :] = hc[:, :Coutp]
                hn_ref[pl.ds(r0, PCH), :] = hc[:, Coutp:]
                return carry

            lax.fori_loop(0, N // PCH, proj, 0)

        # ---- per-row VMEM-local gather of projected neighbors + running max over K
        row0 = pl.multiple_of(nt * TN, TN)
        jbase0 = (b * N + row0) * K

        def row_body(n, carry):
            jb = jbase0 + n * K

            def hrow(off):   # (1, Coutp) projected-neighbor row
                return hn_ref[pl.ds(idx_ref[off], 1), :]

            def prow(off):   # (1, Coutp) projected-center row (general path only)
                return p1_ref[pl.ds(idx_ref[off], 1), :]

            if gather_center:
                # General path: center index arbitrary / may vary over k.
                acc = prow(ioff + jb) + hrow(jb)
                for k in range(1, K):
                    acc = jnp.maximum(acc, prow(ioff + jb + k) + hrow(jb + k))
            else:
                # gcn_lib path: center index == arange(N), constant over k, so
                # max_k(p1_i + h_jk) == p1_i + max_k(h_jk); only h rows gathered.
                acc = hrow(jb)
                for k in range(1, K):
                    acc = jnp.maximum(acc, hrow(jb + k))
            mx_ref[pl.ds(n, 1), :] = acc
            return carry

        lax.fori_loop(0, TN, row_body, 0)

        # ---- bias + ReLU once after the max (exact); lane-dense (Coutp%128==0) store
        if gather_center:
            h = mx_ref[...] + b_ref[...]
        else:
            h = p1_ref[pl.ds(row0, TN), :] + mx_ref[...] + b_ref[...]
        o_ref[0] = jnp.maximum(h, 0.0).astype(o_ref.dtype)

    return kernel


def edge_conv2d(x, edge_index, w, b, *, compute_dtype=jnp.bfloat16,
                tile_n_cap=256, center_index_is_identity=True,
                channels_last_output=False):
    """EdgeConv2d forward.

    x: (B, C, N, 1); edge_index: (2, B, N, K) int; w: (2C, Cout) (PyTorch Conv2d
    weight (Cout, 2C, 1, 1) transposed); b: (Cout,).  Returns (B, Cout, N, 1) in
    x.dtype (or channels-last (B, N, Cout) if channels_last_output=True).

    center_index_is_identity: True for the standard gcn_lib DenseDilatedKnnGraph
    construction (edge_index[1] == arange(N) replicated over K).  Set False for
    arbitrary / permuted center indices -> the kernel gathers the center stream
    explicitly.  The f32 compute_dtype path is the bit-exact reference; the bf16
    default feeds the MXU in bf16 with f32 accumulation.
    """
    B, C, N, _ = x.shape
    K = edge_index.shape[-1]
    Cout = w.shape[-1]
    Coutp = _round_up(Cout, 128)                    # lane-dense output stores

    # ---- exact weight fold + fused [W1 | W2] RHS (single MXU pass per chunk) ----
    w1 = (w[:C] - w[C:]).astype(jnp.float32)        # fold done in f32, cast after
    w2 = w[C:].astype(jnp.float32)
    pad = Coutp - Cout
    if pad:
        w1 = jnp.pad(w1, ((0, 0), (0, pad)))
        w2 = jnp.pad(w2, ((0, 0), (0, pad)))
    wc = jnp.concatenate([w1, w2], axis=1).astype(compute_dtype)   # (C, 2*Coutp)
    b2d = jnp.pad(b.astype(jnp.float32), (0, pad)).reshape(1, Coutp)

    # ---- channels-last vertex features + flattened neighbor indices (SMEM) ----
    xv = jnp.transpose(x[..., 0], (0, 2, 1)).astype(compute_dtype)  # (B, N, C)
    idx_j = edge_index[0].astype(jnp.int32).reshape(-1)             # (B*N*K,)
    if center_index_is_identity:
        idx_flat = idx_j
    else:
        idx_i = edge_index[1].astype(jnp.int32).reshape(-1)
        idx_flat = jnp.concatenate([idx_j, idx_i])                  # (2*B*N*K,)
    # TODO(synk): for very large B*N*K the scalar-prefetch array outgrows SMEM;
    # stream edge_index through VMEM / chunked DMA instead.

    TN = _pick_tile_n(N, B, tile_n_cap)
    PCH = _pick_proj_chunk(N)
    grid = (B, N // TN)

    # ---- VMEM budget (v7x has only 64 MiB/TC: size the limit, don't blanket 64M) --
    cbytes = jnp.dtype(compute_dtype).itemsize
    obytes = jnp.dtype(x.dtype).itemsize
    vmem_need = (
        2 * _round_up(N, 8) * _round_up(C, 128) * cbytes        # xv block (dbl-buf)
        + 2 * _round_up(C, 8) * 2 * Coutp * cbytes              # fused weights
        + 2 * 8 * Coutp * 4                                     # bias
        + 2 * _round_up(TN, 8) * Coutp * obytes                 # out tile (dbl-buf)
        + (2 * _round_up(N, 8) + _round_up(TN, 8)) * Coutp * 4  # p1 / hn / mx scratch
    )
    vmem_limit = int(min(max(vmem_need * 5 // 4, 8 << 20), 48 << 20))
    vmem_limit = max(vmem_limit, int(vmem_need) + (2 << 20))

    kernel = _make_edge_conv_kernel(
        B=B, N=N, K=K, TN=TN, PCH=PCH, Coutp=Coutp,
        gather_center=not center_index_is_identity)

    out = pl.pallas_call(
        kernel,
        out_shape=jax.ShapeDtypeStruct((B, N, Coutp), x.dtype),
        grid_spec=pltpu.PrefetchScalarGridSpec(
            num_scalar_prefetch=1,
            grid=grid,
            in_specs=[
                pl.BlockSpec((1, N, C), lambda bb, nt, idx: (bb, 0, 0)),
                pl.BlockSpec((C, 2 * Coutp), lambda bb, nt, idx: (0, 0)),
                pl.BlockSpec((1, Coutp), lambda bb, nt, idx: (0, 0)),
            ],
            out_specs=pl.BlockSpec((1, TN, Coutp), lambda bb, nt, idx: (bb, nt, 0)),
            scratch_shapes=[
                pltpu.VMEM((N, Coutp), jnp.float32),   # p1 = xv @ (W[:C]-W[C:])
                pltpu.VMEM((N, Coutp), jnp.float32),   # h  = xv @ W[C:]
                pltpu.VMEM((TN, Coutp), jnp.float32),  # per-tile running max
            ],
        ),
        compiler_params=pltpu.CompilerParams(
            # Batch axis "parallel" (megacore split on v7x).  The N-tile axis must
            # stay "arbitrary": the per-batch projection scratch is filled at
            # nt == 0 and reused by later tiles of the same batch on that core.
            # TODO(synk): with B == 1 only one TensorCore gets work on v7x; add a
            # leading parallel axis over N halves (each half re-projecting h).
            dimension_semantics=("parallel", "arbitrary"),
            vmem_limit_bytes=vmem_limit,
        ),
    )(idx_flat, xv, wc, b2d)

    if Coutp != Cout:
        out = out[:, :, :Cout]                          # (B, N, Cout)
    if channels_last_output:
        return out
    # TODO(synk): callers that can consume channels-last should pass
    # channels_last_output=True and skip this HBM round-trip transpose.
    return jnp.transpose(out, (0, 2, 1))[..., None]     # (B, Cout, N, 1) NCHW


def edge_conv2d_ref(x, edge_index, w, b):
    """Pure-JAX reference mirroring the PyTorch forward exactly."""
    xv = jnp.transpose(x[..., 0], (0, 2, 1))                        # (B, N, C)
    gather = jax.vmap(lambda xb, ib: xb[ib])
    x_i = gather(xv, edge_index[1])                                 # (B, N, K, C)
    x_j = gather(xv, edge_index[0])
    feat = jnp.concatenate([x_i, x_j - x_i], axis=-1)               # (B, N, K, 2C)
    h = jnp.maximum(jnp.einsum("bnkc,cd->bnkd", feat, w) + b, 0.0)
    out = jnp.max(h, axis=2)                                        # (B, N, Cout)
    return jnp.transpose(out, (0, 2, 1))[..., None]


if __name__ == "__main__":
    B, C, N, K, Cout = 2, 4, 16, 8, 32

    key = jax.random.PRNGKey(0)
    k_x, k_e, k_w, k_b, k_c = jax.random.split(key, 5)

    x = jax.random.normal(k_x, (B, C, N, 1), dtype=jnp.float32)

    # edge_index as built by gcn_lib's DenseDilatedKnnGraph:
    #   row 0 = kNN neighbor indices, row 1 = center indices (arange over N).
    nn_idx = jax.random.randint(k_e, (B, N, K), 0, N, dtype=jnp.int32)
    center_idx = jnp.broadcast_to(
        jnp.arange(N, dtype=jnp.int32)[None, :, None], (B, N, K))
    edge_index = jnp.stack([nn_idx, center_idx], axis=0)            # (2, B, N, K)

    # deterministic Conv2d(2C, Cout, 1, bias=True) parameters
    # (PyTorch weight (Cout, 2C, 1, 1) stored transposed as (2C, Cout))
    fan_in = 2 * C
    bound = 1.0 / (fan_in ** 0.5)
    w = jax.random.uniform(k_w, (2 * C, Cout), jnp.float32, -bound, bound)
    bias = jax.random.uniform(k_b, (Cout,), jnp.float32, -bound, bound)

    ref = edge_conv2d_ref(x, edge_index, w, bias)

    # f32 compute path: the restructuring (weight fold, project-once, in-kernel
    # gather+max, post-max bias/ReLU) is algebraically exact -> float-level match.
    out_f32 = edge_conv2d(x, edge_index, w, bias, compute_dtype=jnp.float32)
    jax.block_until_ready(out_f32)
    assert out_f32.shape == (B, Cout, N, 1), out_f32.shape
    assert jnp.allclose(out_f32, ref, atol=1e-5, rtol=1e-5), "f32 mismatch vs reference"

    # default bf16-fed MXU path (f32 accumulation): small quantization error expected.
    out_bf16 = edge_conv2d(x, edge_index, w, bias)
    jax.block_until_ready(out_bf16)
    assert out_bf16.shape == (B, Cout, N, 1), out_bf16.shape
    assert jnp.allclose(out_bf16, ref, atol=3e-2, rtol=3e-2), "bf16 mismatch vs reference"

    # general fallback path: arbitrary (non-arange, k-varying) center indices.
    rand_center = jax.random.randint(k_c, (B, N, K), 0, N, dtype=jnp.int32)
    edge_index_gen = jnp.stack([nn_idx, rand_center], axis=0)
    ref_gen = edge_conv2d_ref(x, edge_index_gen, w, bias)
    out_gen = edge_conv2d(x, edge_index_gen, w, bias, compute_dtype=jnp.float32,
                          center_index_is_identity=False)
    jax.block_until_ready(out_gen)
    assert jnp.allclose(out_gen, ref_gen, atol=1e-5, rtol=1e-5), "general-path mismatch"

    print("KERNEL_OK")
</pallas_src>

<mosaic_0001>
module attributes {stable_mosaic.version = 11 : i64} {
  func.func @kernel(%arg0: i32, %arg1: i32, %arg2: memref<256xi32, #tpu.memory_space<smem>>, %arg3: memref<1x16x4xf32, #tpu.memory_space<vmem>>, %arg4: memref<4x256xf32, #tpu.memory_space<vmem>>, %arg5: memref<1x128xf32, #tpu.memory_space<vmem>>, %arg6: memref<1x8x128xf32, #tpu.memory_space<vmem>>, %arg7: memref<16x128xf32, #tpu.memory_space<vmem>>, %arg8: memref<16x128xf32, #tpu.memory_space<vmem>>, %arg9: memref<8x128xf32, #tpu.memory_space<vmem>>) attributes {dimension_semantics = [#tpu.dimension_semantics<parallel>, #tpu.dimension_semantics<arbitrary>], iteration_bounds = array<i64: 2, 2>, scalar_prefetch = 1 : i64, scratch_operands = 3 : i64, tpu.core_type = #tpu.core_type<tc>, window_params = [{transform_indices = @transform_0, window_bounds = array<i64: 1, 16, 4>}, {pipeline_mode = #tpu.pipeline_mode<synchronous>, transform_indices = @transform_1, window_bounds = array<i64: 4, 256>}, {pipeline_mode = #tpu.pipeline_mode<synchronous>, transform_indices = @transform_2, window_bounds = array<i64: 1, 128>}, {transform_indices = @transform_3, window_bounds = array<i64: 1, 8, 128>}]} {
    %c0_i32 = arith.constant 0 : i32
    %0 = arith.cmpi eq, %arg1, %c0_i32 : i32
    %1 = arith.extui %0 : i1 to i32
    %c0_i32_0 = arith.constant 0 : i32
    %2 = arith.cmpi ne, %1, %c0_i32_0 : i32
    scf.if %2 {
      %c0_12 = arith.constant 0 : index
      %c0_13 = arith.constant 0 : index
      %21 = vector.load %arg4[%c0_12, %c0_13] : memref<4x256xf32, #tpu.memory_space<vmem>>, vector<4x256xf32>
      %c0_i32_14 = arith.constant 0 : i32
      %c16_i32_15 = arith.constant 16 : i32
      %22 = arith.muli %c0_i32_14, %c16_i32_15 : i32
      %23 = tpu.assume_multiple %22, 16 : i32
      %c0_16 = arith.constant 0 : index
      %24 = arith.index_cast %23 : i32 to index
      %c0_17 = arith.constant 0 : index
      %25 = vector.load %arg3[%c0_16, %24, %c0_17] : memref<1x16x4xf32, #tpu.memory_space<vmem>>, vector<1x16x4xf32>
      %26 = vector.shape_cast %25 : vector<1x16x4xf32> to vector<16x4xf32>
      %cst_18 = arith.constant dense<0.000000e+00> : vector<16x256xf32>
      %27 = tpu.matmul %26, %21, %cst_18 {dimension_numbers = #tpu.dot_dimension_numbers<[1], [0], [0], [1], [0, 0, 1, 1], [], []>} : vector<16x4xf32>, vector<4x256xf32>, vector<16x256xf32> -> vector<16x256xf32>
      %28 = vector.extract_strided_slice %27 {offsets = [0, 0], sizes = [16, 128], strides = [1, 1]} : vector<16x256xf32> to vector<16x128xf32>
      %29 = arith.index_cast %23 : i32 to index
      %c0_19 = arith.constant 0 : index
      %30 = vector.load %arg7[%29, %c0_19] : memref<16x128xf32, #tpu.memory_space<vmem>>, vector<16x128xf32>
      tpu.vector_store %arg7[%29, %c0_19], %28 {strides = array<i32>} : memref<16x128xf32, #tpu.memory_space<vmem>>, vector<16x128xf32>,
      %31 = vector.extract_strided_slice %27 {offsets = [0, 128], sizes = [16, 128], strides = [1, 1]} : vector<16x256xf32> to vector<16x128xf32>
      %32 = arith.index_cast %23 : i32 to index
      %c0_20 = arith.constant 0 : index
      %33 = vector.load %arg8[%32, %c0_20] : memref<16x128xf32, #tpu.memory_space<vmem>>, vector<16x128xf32>
      tpu.vector_store %arg8[%32, %c0_20], %31 {strides = array<i32>} : memref<16x128xf32, #tpu.memory_space<vmem>>, vector<16x128xf32>,
      %c1_i32_21 = arith.constant 1 : i32
    } else {
    }
    %c8_i32 = arith.constant 8 : i32
    %3 = arith.muli %arg1, %c8_i32 : i32
    %4 = tpu.assume_multiple %3, 8 : i32
    %c16_i32 = arith.constant 16 : i32
    %5 = arith.muli %arg0, %c16_i32 : i32
    %6 = arith.addi %5, %4 : i32
    %c8_i32_1 = arith.constant 8 : i32
    %7 = arith.muli %6, %c8_i32_1 : i32
    %c0_i32_2 = arith.constant 0 : i32
    %c8_i32_3 = arith.constant 8 : i32
    %8 = arith.addi %c0_i32_2, %c8_i32_3 : i32
    %c1_i32 = arith.constant 1 : i32
    scf.for %arg10 = %c0_i32_2 to %8 step %c1_i32  : i32 {
      %c8_i32_12 = arith.constant 8 : i32
      %21 = arith.muli %arg10, %c8_i32_12 : i32
      %22 = arith.addi %7, %21 : i32
      %23 = arith.index_cast %22 : i32 to index
      %24 = memref.load %arg2[%23] : memref<256xi32, #tpu.memory_space<smem>>
      %25 = arith.index_cast %24 : i32 to index
      %c0_13 = arith.constant 0 : index
      %26 = vector.load %arg8[%25, %c0_13] : memref<16x128xf32, #tpu.memory_space<vmem>>, vector<1x128xf32>
      %c1_i32_14 = arith.constant 1 : i32
      %27 = arith.addi %22, %c1_i32_14 : i32
      %28 = arith.index_cast %27 : i32 to index
      %29 = memref.load %arg2[%28] : memref<256xi32, #tpu.memory_space<smem>>
      %30 = arith.index_cast %29 : i32 to index
      %c0_15 = arith.constant 0 : index
      %31 = vector.load %arg8[%30, %c0_15] : memref<16x128xf32, #tpu.memory_space<vmem>>, vector<1x128xf32>
      %32 = arith.maximumf %26, %31 : vector<1x128xf32>
      %c2_i32 = arith.constant 2 : i32
      %33 = arith.addi %22, %c2_i32 : i32
      %34 = arith.index_cast %33 : i32 to index
      %35 = memref.load %arg2[%34] : memref<256xi32, #tpu.memory_space<smem>>
      %36 = arith.index_cast %35 : i32 to index
      %c0_16 = arith.constant 0 : index
      %37 = vector.load %arg8[%36, %c0_16] : memref<16x128xf32, #tpu.memory_space<vmem>>, vector<1x128xf32>
      %38 = arith.maximumf %32, %37 : vector<1x128xf32>
      %c3_i32 = arith.constant 3 : i32
      %39 = arith.addi %22, %c3_i32 : i32
      %40 = arith.index_cast %39 : i32 to index
      %41 = memref.load %arg2[%40] : memref<256xi32, #tpu.memory_space<smem>>
      %42 = arith.index_cast %41 : i32 to index
      %c0_17 = arith.constant 0 : index
      %43 = vector.load %arg8[%42, %c0_17] : memref<16x128xf32, #tpu.memory_space<vmem>>, vector<1x128xf32>
      %44 = arith.maximumf %38, %43 : vector<1x128xf32>
      %c4_i32 = arith.constant 4 : i32
      %45 = arith.addi %22, %c4_i32 : i32
      %46 = arith.index_cast %45 : i32 to index
      %47 = memref.load %arg2[%46] : memref<256xi32, #tpu.memory_space<smem>>
      %48 = arith.index_cast %47 : i32 to index
      %c0_18 = arith.constant 0 : index
      %49 = vector.load %arg8[%48, %c0_18] : memref<16x128xf32, #tpu.memory_space<vmem>>, vector<1x128xf32>
      %50 = arith.maximumf %44, %49 : vector<1x128xf32>
      %c5_i32 = arith.constant 5 : i32
      %51 = arith.addi %22, %c5_i32 : i32
      %52 = arith.index_cast %51 : i32 to index
      %53 = memref.load %arg2[%52] : memref<256xi32, #tpu.memory_space<smem>>
      %54 = arith.index_cast %53 : i32 to index
      %c0_19 = arith.constant 0 : index
      %55 = vector.load %arg8[%54, %c0_19] : memref<16x128xf32, #tpu.memory_space<vmem>>, vector<1x128xf32>
      %56 = arith.maximumf %50, %55 : vector<1x128xf32>
      %c6_i32 = arith.constant 6 : i32
      %57 = arith.addi %22, %c6_i32 : i32
      %58 = arith.index_cast %57 : i32 to index
      %59 = memref.load %arg2[%58] : memref<256xi32, #tpu.memory_space<smem>>
      %60 = arith.index_cast %59 : i32 to index
      %c0_20 = arith.constant 0 : index
      %61 = vector.load %arg8[%60, %c0_20] : memref<16x128xf32, #tpu.memory_space<vmem>>, vector<1x128xf32>
      %62 = arith.maximumf %56, %61 : vector<1x128xf32>
      %c7_i32 = arith.constant 7 : i32
      %63 = arith.addi %22, %c7_i32 : i32
      %64 = arith.index_cast %63 : i32 to index
      %65 = memref.load %arg2[%64] : memref<256xi32, #tpu.memory_space<smem>>
      %66 = arith.index_cast %65 : i32 to index
      %c0_21 = arith.constant 0 : index
      %67 = vector.load %arg8[%66, %c0_21] : memref<16x128xf32, #tpu.memory_space<vmem>>, vector<1x128xf32>
      %68 = arith.maximumf %62, %67 : vector<1x128xf32>
      %69 = arith.index_cast %arg10 : i32 to index
      %c0_22 = arith.constant 0 : index
      %70 = vector.load %arg9[%69, %c0_22] : memref<8x128xf32, #tpu.memory_space<vmem>>, vector<1x128xf32>
      tpu.vector_store %arg9[%69, %c0_22], %68 {strides = array<i32>} : memref<8x128xf32, #tpu.memory_space<vmem>>, vector<1x128xf32>,
    }
    %c8_i32_4 = arith.constant 8 : i32
    %9 = arith.index_cast %4 : i32 to index
    %c0 = arith.constant 0 : index
    %10 = vector.load %arg7[%9, %c0] : memref<16x128xf32, #tpu.memory_space<vmem>>, vector<8x128xf32>
    %c0_5 = arith.constant 0 : index
    %c0_6 = arith.constant 0 : index
    %11 = vector.load %arg9[%c0_5, %c0_6] : memref<8x128xf32, #tpu.memory_space<vmem>>, vector<8x128xf32>
    %12 = arith.addf %10, %11 : vector<8x128xf32>
    %c0_7 = arith.constant 0 : index
    %c0_8 = arith.constant 0 : index
    %13 = vector.load %arg5[%c0_7, %c0_8] : memref<1x128xf32, #tpu.memory_space<vmem>>, vector<1x128xf32>
    %14 = vector.broadcast %13 : vector<1x128xf32> to vector<8x128xf32>
    %15 = arith.addf %12, %14 : vector<8x128xf32>
    %cst = arith.constant 0.000000e+00 : f32
    %16 = vector.broadcast %cst : f32 to vector<8x128xf32>
    %17 = arith.maximumf %15, %16 : vector<8x128xf32>
    %c0_9 = arith.constant 0 : index
    %c0_10 = arith.constant 0 : index
    %c0_11 = arith.constant 0 : index
    %18 = vector.load %arg6[%c0_9, %c0_10, %c0_11] : memref<1x8x128xf32, #tpu.memory_space<vmem>>, vector<1x8x128xf32>
    %19 = vector.shape_cast %18 : vector<1x8x128xf32> to vector<8x128xf32>
    %20 = vector.shape_cast %17 : vector<8x128xf32> to vector<1x8x128xf32>
    tpu.vector_store %arg6[%c0_9, %c0_10, %c0_11], %20 {strides = array<i32>} : memref<1x8x128xf32, #tpu.memory_space<vmem>>, vector<1x8x128xf32>,
    return
  }
  func.func @transform_0(%arg0: i32, %arg1: i32, %arg2: memref<256xi32, #tpu.memory_space<smem>>) -> (i32, i32, i32) {
    %c0_i32 = arith.constant 0 : i32
    %c0_i32_0 = arith.constant 0 : i32
    %c0_i32_1 = arith.constant 0 : i32
    return %arg0, %c0_i32, %c0_i32_0 : i32, i32, i32
  }
  func.func @transform_1(%arg0: i32, %arg1: i32, %arg2: memref<256xi32, #tpu.memory_space<smem>>) -> (i32, i32) {
    %c0_i32 = arith.constant 0 : i32
    %c0_i32_0 = arith.constant 0 : i32
    %c0_i32_1 = arith.constant 0 : i32
    return %c0_i32, %c0_i32_0 : i32, i32
  }
  func.func @transform_2(%arg0: i32, %arg1: i32, %arg2: memref<256xi32, #tpu.memory_space<smem>>) -> (i32, i32) {
    %c0_i32 = arith.constant 0 : i32
    %c0_i32_0 = arith.constant 0 : i32
    %c0_i32_1 = arith.constant 0 : i32
    return %c0_i32, %c0_i32_0 : i32, i32
  }
  func.func @transform_3(%arg0: i32, %arg1: i32, %arg2: memref<256xi32, #tpu.memory_space<smem>>) -> (i32, i32, i32) {
    %c0_i32 = arith.constant 0 : i32
    %c0_i32_0 = arith.constant 0 : i32
    return %arg0, %arg1, %c0_i32 : i32, i32, i32
  }
}

</mosaic_0001>

<llo_original>
// kernel: tpu_custom_call.1
$region0: #{tpu_custom_call.1}
  #allocation0 [shape = 'u32[]', space=smem, size = 0x4, offset = 0x4, fixed_abs, tag = 'smem constant byte address 0x4 - core index']
  #allocation1 [shape = 'u32[144,128]{1,0:T(1,128)}', space=vmem, size = 0x12000, scoped, tag = 'internal scratch']
  #allocation2 [shape = 'f32[16,128]{1,0:T(8,128)}', space=vmem, size = 0x2000, scoped, tag = 'scratch operand']
  #allocation3 [shape = 'f32[16,128]{1,0:T(8,128)}', space=vmem, size = 0x2000, scoped, tag = 'scratch operand']
  #allocation4 [shape = 'f32[8,128]{1,0:T(8,128)}', space=vmem, size = 0x1000, scoped, tag = 'scratch operand']
  #allocation5 [shape = 's32[1]{0}', space=sflag, size = 0x4, scoped, tag = 'scoped memory for tpu_custom_call.1']
  #allocation6 [shape = 'u8[1024]{0}', space=smem, size = 0x400, scoped, tag = 'prefetched SMEM operand 0']
  %s0 = inlined_call_operand.vmem [shape: s32[256], index: 0, kind: input, shape index: {}]
  %s1 = inlined_call_operand.vmem [shape: f32[2,16,4], index: 1, kind: input, shape index: {}]
  %s2 = inlined_call_operand.vmem [shape: f32[4,256], index: 2, kind: input, shape index: {}]
  %s3 = inlined_call_operand.vmem [shape: f32[1,128], index: 3, kind: input, shape index: {}]
  %s4 = inlined_call_operand.hbm [shape: f32[2,16,128], index: 4, kind: output, shape index: {}]
  %s5 = sld [smem:[#allocation0]]
  $region56: #{tpu_custom_call.1} parent=0
    _
  %s7 = ssub.s32 1, %s5
  %s8 = scalar_select 0, %s7, %s5
  %s9 = sshll.u32 %s0, 4
  %s10 = int_to_ptr.vmem [resolvable:$true] %s9
  %12 = dma.vmem_to_smem %s10, 32, [#allocation6], [#allocation5]
  %13 = dma.done [#allocation5], 32
  %14 = sfence
  $region1: #{tpu_custom_call.1} parent=0
    #allocation7 [shape = 'u8[8192]{0}', space=vmem, size = 0x2000, scoped, tag = 'output window, operand 0']
    #allocation8 [shape = 's32[2]{0}', space=sflag, size = 0x8, scoped, tag = 'scoped memory for tpu_custom_call.1']
    %15 = vsyncpa [#allocation8], 0
    %s16 = scalar_lea.sflag [#allocation8], 1
    %17 = vsyncpa %s16, 0
    loop: start=0, step=1, limit=6
    $region2: #{tpu_custom_call.1} parent=1 // loop_pre_header
      _
    $region3: #{tpu_custom_call.1} parent=1 // loop_header
      %s19 = sphi 0, %s23
      %p20 = scmp.ge.s32.totalorder %s19, 6
      %s26 = sphi 0, %s38
      %s27 = sphi 0, %s34
      %s28 = sphi 0, %s26
      %s29 = sphi 0, %s27
      %s30 = sphi 0, %s28
      %s31 = sphi 0, %s29
      %s41 = sphi 0, %s43
      %s44 = sphi 0, %s41
      %s45 = sphi 0, %s44
      %s61 = sphi 0, %s45
      %s65 = sphi 0, %s65
      %s67 = sphi 0, %s65
      %s68 = sphi 0, %s67
      %s82 = sphi 0, %s68
      %s86 = sphi 0, %s86
      %s88 = sphi 0, %s86
      %s89 = sphi 0, %s88
      %s103 = sphi 0, %s89
      %s111 = sphi 0, %s113
      %s114 = sphi 0, %s111
      %s115 = sphi 0, %s114
      %s131 = sphi 0, %s115
    $region4: #{tpu_custom_call.1} parent=1 // loop_header_branch
      %22 = sbr.rel (%p20) target = $region8
    $region5: #{tpu_custom_call.1} parent=1 // loop_body
      %s24 = ssub.s32 %s19, 1
      %s25 = ssub.s32 %s19, 2
      %s32 = sadd.s32 1, %s27
      %p33 = scmp.ge.s32.totalorder %s32, 2
      %s34 = scalar_select %p33, 0, %s32
      %s35 = sadd.s32 1, %s26
      %s36 = scalar_select %p33, %s35, %s26
      %p37 = scmp.ge.s32.totalorder %s36, 2
      %s38 = scalar_select %p37, 0, %s36
      %s39 = ssub.s32 %s26, %s38
      %p40 = scmp.eq.s32.totalorder %s39, 0
      %s42 = sadd.s32 %s41, 1
      %s43 = scalar_select %p40, %s41, %s42
      %p46 = pneg %p40
      %p47 = scmp.eq.s32.totalorder %s19, 3
      %p48 = por %p46, %p47
      %p49 = scmp.ne.s32.totalorder %s41, %s44
      %p50 = scmp.eq.s32.totalorder %s19, 0
      %p51 = por %p49, %p50
      %p52 = scmp.ne.s32.totalorder %s41, %s44
      %p53 = scmp.eq.s32.totalorder %s24, 3
      %p54 = por %p52, %p53
      %p55 = scmp.ne.s32.totalorder %s44, %s45
      %p56 = scmp.eq.s32.totalorder %s24, 0
      %p57 = por %p55, %p56
      %p58 = scmp.ne.s32.totalorder %s44, %s45
      %p59 = scmp.eq.s32.totalorder %s25, 3
      %p60 = por %p58, %p59
      %p62 = scmp.ne.s32.totalorder %s45, %s61
      %p63 = scmp.eq.s32.totalorder %s25, 0
      %p64 = por %p62, %p63
      %s66 = sadd.s32 %s65, 1
      %p69 = scmp.eq.s32.totalorder %s19, 3
      %p70 = scmp.ne.s32.totalorder %s65, %s67
      %p71 = scmp.eq.s32.totalorder %s19, 0
      %p72 = por %p70, %p71
      %p73 = scmp.ne.s32.totalorder %s65, %s67
      %p74 = scmp.eq.s32.totalorder %s24, 3
      %p75 = por %p73, %p74
      %p76 = scmp.ne.s32.totalorder %s67, %s68
      %p77 = scmp.eq.s32.totalorder %s24, 0
      %p78 = por %p76, %p77
      %p79 = scmp.ne.s32.totalorder %s67, %s68
      %p80 = scmp.eq.s32.totalorder %s25, 3
      %p81 = por %p79, %p80
      %p83 = scmp.ne.s32.totalorder %s68, %s82
      %p84 = scmp.eq.s32.totalorder %s25, 0
      %p85 = por %p83, %p84
      %s87 = sadd.s32 %s86, 1
      %p90 = scmp.eq.s32.totalorder %s19, 3
      %p91 = scmp.ne.s32.totalorder %s86, %s88
      %p92 = scmp.eq.s32.totalorder %s19, 0
      %p93 = por %p91, %p92
      %p94 = scmp.ne.s32.totalorder %s86, %s88
      %p95 = scmp.eq.s32.totalorder %s24, 3
      %p96 = por %p94, %p95
      %p97 = scmp.ne.s32.totalorder %s88, %s89
      %p98 = scmp.eq.s32.totalorder %s24, 0
      %p99 = por %p97, %p98
      %p100 = scmp.ne.s32.totalorder %s88, %s89
      %p101 = scmp.eq.s32.totalorder %s25, 3
      %p102 = por %p100, %p101
      %p104 = scmp.ne.s32.totalorder %s89, %s103
      %p105 = scmp.eq.s32.totalorder %s25, 0
      %p106 = por %p104, %p105
      %s107 = ssub.s32 %s26, %s38
      %s108 = ssub.s32 %s27, %s34
      %s109 = sor.u32 %s107, %s108
      %p110 = scmp.eq.s32.totalorder %s109, 0
      %s112 = sadd.s32 %s111, 1
      %s113 = scalar_select %p110, %s111, %s112
      %p116 = pneg %p110
      %p117 = scmp.eq.s32.totalorder %s19, 3
      %p118 = por %p116, %p117
      %p119 = scmp.ne.s32.totalorder %s111, %s114
      %p120 = scmp.eq.s32.totalorder %s19, 0
      %p121 = por %p119, %p120
      %p122 = scmp.ne.s32.totalorder %s111, %s114
      %p123 = scmp.eq.s32.totalorder %s24, 3
      %p124 = por %p122, %p123
      %p125 = scmp.ne.s32.totalorder %s114, %s115
      %p126 = scmp.eq.s32.totalorder %s24, 0
      %p127 = por %p125, %p126
      %p128 = scmp.ne.s32.totalorder %s114, %s115
      %p129 = scmp.eq.s32.totalorder %s25, 3
      %p130 = por %p128, %p129
      %p132 = scmp.ne.s32.totalorder %s115, %s131
      %p133 = scmp.eq.s32.totalorder %s25, 0
      %p134 = por %p132, %p133
      %p135 = scmp.le.s32.totalorder 1, %s19
      %p136 = scmp.lt.s32.totalorder %s19, 5
      %p137 = pnand %p135, %p136
      %p138 = pneg %p137
      // Predicated region
      $region9: #{tpu_custom_call.1} parent=5 // pred_check
        _
      $region10: #{tpu_custom_call.1} parent=5 // pred_check_branch
        %140 = sbr.rel (%p137) target = $region12
      $region11: #{tpu_custom_call.1} parent=5 // pred_region
        %s141 = ssub.s32 %s19, 1
        // Predicated region
        $region13: #{tpu_custom_call.1} parent=11 // pred_check
          %p142 = pneg %p78
        $region14: #{tpu_custom_call.1} parent=11 // pred_check_branch
          %144 = sbr.rel (%p142) target = $region16
        $region15: #{tpu_custom_call.1} parent=11 // pred_region
          _
        $region16: #{tpu_custom_call.1} parent=11 // pred_fallthru
          _
        // Predicated region
        $region17: #{tpu_custom_call.1} parent=11 // pred_check
          %p145 = pneg %p99
        $region18: #{tpu_custom_call.1} parent=11 // pred_check_branch
          %147 = sbr.rel (%p145) target = $region20
        $region19: #{tpu_custom_call.1} parent=11 // pred_region
          _
        $region20: #{tpu_custom_call.1} parent=11 // pred_fallthru
          _
      $region12: #{tpu_custom_call.1} parent=5 // pred_fallthru
        _
      %p148 = scmp.lt.s32.totalorder %s19, 4
      // Predicated region
      $region21: #{tpu_custom_call.1} parent=5 // pred_check
        %p149 = pneg %p148
      $region22: #{tpu_custom_call.1} parent=5 // pred_check_branch
        %151 = sbr.rel (%p149) target = $region24
      $region23: #{tpu_custom_call.1} parent=5 // pred_region
        // Predicated region
        $region25: #{tpu_custom_call.1} parent=23 // pred_check
          %p152 = pneg %p51
        $region26: #{tpu_custom_call.1} parent=23 // pred_check_branch
          %154 = sbr.rel (%p152) target = $region28
        $region27: #{tpu_custom_call.1} parent=23 // pred_region
          %p155 = scmp.lt.s32.totalorder %s26, 1
          %s156 = scalar_select %p155, %s26, 1
          %s157 = smul.addr %s156, 2
          %s158 = smul.addr %s157, 8
          %s159 = scalar_lea.vmem %s1, %s158
        $region28: #{tpu_custom_call.1} parent=23 // pred_fallthru
          _
      $region24: #{tpu_custom_call.1} parent=5 // pred_fallthru
        _
      %p160 = scmp.le.s32.totalorder 1, %s19
      %p161 = scmp.lt.s32.totalorder %s19, 5
      %p162 = pnand %p160, %p161
      %p163 = pneg %p162
      // Predicated region
      $region29: #{tpu_custom_call.1} parent=5 // pred_check
        _
      $region30: #{tpu_custom_call.1} parent=5 // pred_check_branch
        %165 = sbr.rel (%p162) target = $region32
      $region31: #{tpu_custom_call.1} parent=5 // pred_region
        %s166 = ssub.s32 %s19, 1
        %p167 = scmp.lt.s32.totalorder %s28, 1
        %s168 = scalar_select %p167, %s28, 1
        %s169 = smul.addr %s168, 2
        %s170 = smul.addr %s169, 8
        %s171 = scalar_lea.vmem %s1, %s170
        %p172 = pneg %p57
        %p173 = pneg %p54
        %p174 = pneg %p78
        %p175 = pneg %p75
        %p176 = pneg %p99
        %p177 = pneg %p96
        %p178 = pneg %p127
        %p179 = pneg %p124
        %s180 = sand.u32 %s114, 1
        %s181 = scalar_lea.sflag [#allocation8], %s180
        %s182 = sand.u32 %s114, 1
        %s183 = smul.addr %s182, 8
        %s184 = scalar_lea.vmem [#allocation7], %s183
        %p185 = scmp.lt.s32.totalorder %s28, 1
        %s186 = scalar_select %p185, %s28, 1
        %s187 = smul.addr %s186, 2
        %s188 = smul.addr %s187, 8
        %s189 = scalar_lea.vmem %s1, %s188
        %p190 = scmp.eq.s32.totalorder %s29, 0
        // Predicated region
        $region33: #{tpu_custom_call.1} parent=31 // pred_check
          %p191 = pneg %p190
        $region34: #{tpu_custom_call.1} parent=31 // pred_check_branch
          %193 = sbr.rel (%p191) target = $region36
        $region35: #{tpu_custom_call.1} parent=31 // pred_region
          %v194 = vld [vmem:[%s2] sm:$0xff]
          %v195 = vld [vmem:[%s189] sm:$0xff]
          %v196 = vld [vmem:[%s189 + $0x8] sm:$0xff]
          %v198 = vcombine.high %v194, %v194
          %vm199 = vcmask 31744
          %v201 = vsel %vm199, %v195, 0
          %v204 = vsel %vm199, %v196, 0
          %vm206 = vcmask 1043456
          %v207 = vsel %vm206, %v194, 0
          %v209 = vsel %vm206, %v198, 0
          %211 = vmatprep.subr.mxu0 %v209
          %212 = vmatpush1.msra.mxu0 %v207
          %213 = vmatprep.subr.mxu0 0.0
          %214 = vmatpush1.msra.mxu0 0.0
          %215 = vmatprep.subr.mxu0 0.0
          %216 = vmatpush1.msra.mxu0 0.0
          %217 = vmatprep.subr.mxu0 0.0
          %218 = vmatpush1.msra.mxu0 0.0
          %219 = vmatprep.subr.mxu0 0.0
          %220 = vmatpush1.msra.mxu0 0.0
          %221 = vmatprep.subr.mxu0 0.0
          %222 = vmatpush1.msra.mxu0 0.0
          %223 = vmatprep.subr.mxu0 0.0
          %224 = vmatpush1.msra.mxu0 0.0
          %225 = vmatprep.subr.mxu0 0.0
          %226 = vmatpush1.msra.mxu0 0.0
          %227 = vmatprep.subr.mxu0 0.0
          %228 = vmatpush1.msra.mxu0 0.0
          %229 = vmatprep.subr.mxu0 0.0
          %230 = vmatpush1.msra.mxu0 0.0
          %231 = vmatprep.subr.mxu0 0.0
          %232 = vmatpush1.msra.mxu0 0.0
          %233 = vmatprep.subr.mxu0 0.0
          %234 = vmatpush1.msra.mxu0 0.0
          %235 = vmatprep.subr.mxu0 0.0
          %236 = vmatpush1.msra.mxu0 0.0
          %237 = vmatprep.subr.mxu0 0.0
          %238 = vmatpush1.msra.mxu0 0.0
          %239 = vmatprep.subr.mxu0 0.0
          %240 = vmatpush1.msra.mxu0 0.0
          %241 = vmatprep.subr.mxu0 0.0
          %242 = vmatpush1.msra.mxu0 0.0
          %243 = vmatprep.subr.mxu0 0.0
          %244 = vmatpush1.msra.mxu0 0.0
          %245 = vmatprep.subr.mxu0 0.0
          %246 = vmatpush1.msra.mxu0 0.0
          %247 = vmatprep.subr.mxu0 0.0
          %248 = vmatpush1.msra.mxu0 0.0
          %249 = vmatprep.subr.mxu0 0.0
          %250 = vmatpush1.msra.mxu0 0.0
          %251 = vmatprep.subr.mxu0 0.0
          %252 = vmatpush1.msra.mxu0 0.0
          %253 = vmatprep.subr.mxu0 0.0
          %254 = vmatpush1.msra.mxu0 0.0
          %255 = vmatprep.subr.mxu0 0.0
          %256 = vmatpush1.msra.mxu0 0.0
          %257 = vmatprep.subr.mxu0 0.0
          %258 = vmatpush1.msra.mxu0 0.0
          %259 = vmatprep.subr.mxu0 0.0
          %260 = vmatpush1.msra.mxu0 0.0
          %261 = vmatprep.subr.mxu0 0.0
          %262 = vmatpush1.msra.mxu0 0.0
          %263 = vmatprep.subr.mxu0 0.0
          %264 = vmatpush1.msra.mxu0 0.0
          %265 = vmatprep.subr.mxu0 0.0
          %266 = vmatpush1.msra.mxu0 0.0
          %267 = vmatprep.subr.mxu0 0.0
          %268 = vmatpush1.msra.mxu0 0.0
          %269 = vmatprep.subr.mxu0 0.0
          %270 = vmatpush1.msra.mxu0 0.0
          %271 = vmatprep.subr.mxu0 0.0
          %272 = vmatpush1.msra.mxu0 0.0
          %273 = vmatprep.subr.mxu0 0.0
          %274 = vmatpush1.msra.mxu0 0.0
          %275 = vmatprep.mubr.f32.mxu0 0.0
          %276 = vmatmul.mubr.f32.gmra.mrb[0].mxu0 %v201
          %v277 = vpop.f32.mrb[0].mxu0
          %v278 = vadd.f32 0.0, %v277
          %v279 = vpop.f32.mrb[0].mxu0
          %v280 = vadd.f32 0.0, %v279
          %281 = vmatprep.mubr.f32.mxu0 0.0
          %282 = vmatmul.mubr.f32.gmra.mrb[0].mxu0 %v204
          %v283 = vpop.f32.mrb[0].mxu0
          %v284 = vadd.f32 0.0, %v283
          %v285 = vpop.f32.mrb[0].mxu0
          %v286 = vadd.f32 0.0, %v285
          %287 = vdwg.mxu0
          %288 = vst [vmem:[#allocation2] sm:$0xff] %v278
          %289 = vst [vmem:[#allocation2 + $0x8] sm:$0xff] %v284
          %290 = vst [vmem:[#allocation3] sm:$0xff] %v280
          %291 = vst [vmem:[#allocation3 + $0x8] sm:$0xff] %v286
        $region36: #{tpu_custom_call.1} parent=31 // pred_fallthru
          _
        %s292 = smul.u32 %s29, 8
        %s293 = smul.u32 %s28, 16
        %s294 = sadd.s32 %s293, %s292
        %s295 = smul.u32 %s294, 8
        loop: start=0, step=1, limit=8
        $region37: #{tpu_custom_call.1} parent=31 // loop_pre_header
          _
        $region38: #{tpu_custom_call.1} parent=31 // loop_header
          %s297 = sphi 0, %s301
          %p298 = scmp.ge.s32.totalorder %s297, 8
        $region39: #{tpu_custom_call.1} parent=31 // loop_header_branch
          %300 = sbr.rel (%p298) target = $region43
        $region40: #{tpu_custom_call.1} parent=31 // loop_body
          %s302 = smul.u32 %s297, 8
          %s303 = sadd.s32 %s295, %s302
          %s304 = sld [smem:[#allocation6 + %s303]]
          %s305 = scalar_lea.vmem [#allocation3], %s304
          %v306 = vld [vmem:[%s305] sm:$0x1]
          %s307 = sadd.s32 %s303, 1
          %s308 = sld [smem:[#allocation6 + %s307]]
          %s309 = scalar_lea.vmem [#allocation3], %s308
          %v310 = vld [vmem:[%s309] sm:$0x1]
          %v311 = vmax.f32 %v306, %v310
          %s312 = sadd.s32 %s303, 2
          %s313 = sld [smem:[#allocation6 + %s312]]
          %s314 = scalar_lea.vmem [#allocation3], %s313
          %v315 = vld [vmem:[%s314] sm:$0x1]
          %v316 = vmax.f32 %v311, %v315
          %s317 = sadd.s32 %s303, 3
          %s318 = sld [smem:[#allocation6 + %s317]]
          %s319 = scalar_lea.vmem [#allocation3], %s318
          %v320 = vld [vmem:[%s319] sm:$0x1]
          %v321 = vmax.f32 %v316, %v320
          %s322 = sadd.s32 %s303, 4
          %s323 = sld [smem:[#allocation6 + %s322]]
          %s324 = scalar_lea.vmem [#allocation3], %s323
          %v325 = vld [vmem:[%s324] sm:$0x1]
          %v326 = vmax.f32 %v321, %v325
          %s327 = sadd.s32 %s303, 5
          %s328 = sld [smem:[#allocation6 + %s327]]
          %s329 = scalar_lea.vmem [#allocation3], %s328
          %v330 = vld [vmem:[%s329] sm:$0x1]
          %v331 = vmax.f32 %v326, %v330
          %s332 = sadd.s32 %s303, 6
          %s333 = sld [smem:[#allocation6 + %s332]]
          %s334 = scalar_lea.vmem [#allocation3], %s333
          %v335 = vld [vmem:[%s334] sm:$0x1]
          %v336 = vmax.f32 %v331, %v335
          %s337 = sadd.s32 %s303, 7
          %s338 = sld [smem:[#allocation6 + %s337]]
          %s339 = scalar_lea.vmem [#allocation3], %s338
          %v340 = vld [vmem:[%s339] sm:$0x1]
          %v341 = vmax.f32 %v336, %v340
          %s342 = scalar_lea.vmem [#allocation4], %s297
          %343 = vst [vmem:[%s342] sm:$0x1] %v341
        $region41: #{tpu_custom_call.1} parent=31 // loop_footer
          %s301 = sadd.s32 1, %s297
        $region42: #{tpu_custom_call.1} parent=31 // loop_footer_branch
          %296 = sbr.rel target = $region38
        $region43: #{tpu_custom_call.1} parent=31 // loop_exit
          _
        %s344 = scalar_lea.vmem [#allocation2], %s292
        %v345 = vld [vmem:[%s344] sm:$0xff]
        %v346 = vld [vmem:[#allocation4] sm:$0xff]
        %v347 = vadd.f32 %v345, %v346
        %v348 = vld [vmem:[%s3] sm:$0x1]
        %v350 = vlaneseq
        %v351 = vshrl.u32 %v350, 7
        %v352 = vsub.s32 0, %v351
        %v353 = vrot.slane %v348, %v352
        %v355 = vadd.f32 %v347, %v353
        %v356 = vmax.f32 %v355, 0.0
        %357 = vst [vmem:[%s184] sm:$0xff] %v356
        %s358 = sand.u32 %s114, 1
        %s359 = scalar_lea.sflag [#allocation8], %s358
        %s360 = sand.u32 %s114, 1
        %s361 = smul.addr %s360, 8
        %s362 = scalar_lea.vmem [#allocation7], %s361
        // Predicated region
        $region44: #{tpu_custom_call.1} parent=31 // pred_check
          %p363 = pneg %p124
        $region45: #{tpu_custom_call.1} parent=31 // pred_check_branch
          %365 = sbr.rel (%p363) target = $region47
        $region46: #{tpu_custom_call.1} parent=31 // pred_region
          %s367 = ssub.s32 128, 128
          %368 = vsyncadd %s359, %s367
          %s369 = smul.addr %s28, 2
          %s370 = sadd.s32 %s29, %s369
          %s371 = smul.addr %s370, 128
          %s372 = scalar_lea.hbm %s4, %s371
          %s374 = sshll.u32 %s362, 4
          %s375 = int_to_ptr.vmem [resolvable:$true] %s374
          %377 = dma.vmem_to_hbm [thread:$0]  %s375, 128, %s372, %s359
        $region47: #{tpu_custom_call.1} parent=31 // pred_fallthru
          _
      $region32: #{tpu_custom_call.1} parent=5 // pred_fallthru
        _
      %p378 = scmp.le.s32.totalorder 2, %s19
      // Predicated region
      $region48: #{tpu_custom_call.1} parent=5 // pred_check
        %p379 = pneg %p378
      $region49: #{tpu_custom_call.1} parent=5 // pred_check_branch
        %381 = sbr.rel (%p379) target = $region51
      $region50: #{tpu_custom_call.1} parent=5 // pred_region
        %s382 = ssub.s32 %s19, 2
        // Predicated region
        $region52: #{tpu_custom_call.1} parent=50 // pred_check
          %p383 = pneg %p130
        $region53: #{tpu_custom_call.1} parent=50 // pred_check_branch
          %385 = sbr.rel (%p383) target = $region55
        $region54: #{tpu_custom_call.1} parent=50 // pred_region
          %s386 = sand.u32 %s115, 1
          %s387 = scalar_lea.sflag [#allocation8], %s386
          %s388 = sand.u32 %s115, 1
          %s389 = smul.addr %s388, 8
          %s390 = scalar_lea.vmem [#allocation7], %s389
          %391 = dma.done %s387, 128
        $region55: #{tpu_custom_call.1} parent=50 // pred_fallthru
          _
      $region51: #{tpu_custom_call.1} parent=5 // pred_fallthru
        _
    $region6: #{tpu_custom_call.1} parent=1 // loop_footer
      %s23 = sadd.s32 1, %s19
    $region7: #{tpu_custom_call.1} parent=1 // loop_footer_branch
      %18 = sbr.rel target = $region3
    $region8: #{tpu_custom_call.1} parent=1 // loop_exit
      _
    %392 = vsyncpa [#allocation8], 1
    %s393 = scalar_lea.sflag [#allocation8], 1
    %394 = vsyncpa %s393, 1

</llo_original>
